<compile_context>
chip_gen: v7x
topology: tpu7x:2x2x1
jax: 0.10.0
libtpu: 0.0.40
codegen_flags: <defaults>
</compile_context>

<pallas_src>
import jax
import jax.numpy as jnp
from jax.experimental import pallas as pl
from jax.experimental.pallas import tpu as pltpu

# --- module hyper-parameters (small, consistent with the PyTorch module) ---
HIDDEN = 32        # hidden_dim
CONCEPT_DIM = 32   # prototype concept_dim (disappears after the wm@wp fusion)
NUM_CONCEPT = 16   # number of prototype concepts
GLIMPSES = 2
B = 2              # batch
N = 8              # number of tokens / objects

# --- packed parameter buffer layout -----------------------------------------
# rows [0, PACK_W_ROWS): weight matrices, side by side along the lane axis
# row  PACK_W_ROWS     : all biases, side by side along the lane axis
C0_FP = 0                              # fused (mem2concept @ prototype^T) : (H, C)
C0_WC = NUM_CONCEPT                    # map_c^T                           : (H, C)
C0_WS = 2 * NUM_CONCEPT                # sem2hidden^T                      : (G*C, H)
C0_WX = 2 * NUM_CONCEPT + HIDDEN       # x_conv^T                          : (C, G)
PACK_COLS = C0_WX + GLIMPSES
PACK_W_ROWS = max(HIDDEN, GLIMPSES * NUM_CONCEPT, NUM_CONCEPT)


def find_kernel(feat_ref, query_ref, pack_ref, out_ref):
    bsz = query_ref.shape[0]           # static
    ntok = feat_ref.shape[0] // bsz    # static

    feat = feat_ref[...]               # (B*N, H)
    q = query_ref[...]                 # (B, H)
    P = pack_ref[...]                  # (PACK_W_ROWS + 1, PACK_COLS)

    # Static slices of the packed parameter buffer (zero runtime cost).
    w_fp = P[0:HIDDEN, C0_FP:C0_FP + NUM_CONCEPT]                  # (H, C)
    w_c = P[0:HIDDEN, C0_WC:C0_WC + NUM_CONCEPT]                   # (H, C)
    w_s = P[0:GLIMPSES * NUM_CONCEPT, C0_WS:C0_WS + HIDDEN]        # (G*C, H)
    w_x = P[0:NUM_CONCEPT, C0_WX:C0_WX + GLIMPSES]                 # (C, G)
    bias = P[PACK_W_ROWS:PACK_W_ROWS + 1, :]                       # (1, PACK_COLS)
    b_fp = bias[:, C0_FP:C0_FP + NUM_CONCEPT]
    b_c = bias[:, C0_WC:C0_WC + NUM_CONCEPT]
    b_s = bias[:, C0_WS:C0_WS + HIDDEN]

    # query = tanh(map_c(drop(query)))                              -> (B, C)
    qc = jnp.tanh(jnp.dot(q, w_c, preferred_element_type=jnp.float32) + b_c)

    # feat = tanh(prototype(mem2concept(feat)))  -- fused affine map -> (B*N, C)
    f = jnp.tanh(jnp.dot(feat, w_fp, preferred_element_type=jnp.float32) + b_fp)

    # Broadcast each batch's query code over its N token rows        -> (B*N, C)
    qc_rows = jnp.concatenate(
        [jnp.broadcast_to(qc[i:i + 1, :], (ntok, NUM_CONCEPT)) for i in range(bsz)],
        axis=0)

    # Fusion: -(x - y)^2 + relu(x + y)                               -> (B*N, C)
    x = -(f - qc_rows) ** 2 + jnp.maximum(f + qc_rows, 0.0)

    # att_out = x_conv(drop(x)); bias dropped (constant along the token axis,
    # cancels exactly in the softmax below)                          -> (B*N, G)
    a = jnp.dot(x, w_x, preferred_element_type=jnp.float32)

    # softmax over the token axis, per batch                         -> (B, N, G)
    a3 = a.reshape(bsz, ntok, GLIMPSES)
    a3 = a3 - jnp.max(a3, axis=1, keepdims=True)
    e = jnp.exp(a3)
    att = e * pl.reciprocal(jnp.sum(e, axis=1, keepdims=True), approx=False)

    # att_sem[b, g, :] = sum_n att[b, n, g] * f[b, n, :]   (== bmm(att^T, f))
    f3 = f.reshape(bsz, ntok, NUM_CONCEPT)
    glimpse_sems = [jnp.sum(att[:, :, g:g + 1] * f3, axis=1)          # (B, C)
                    for g in range(GLIMPSES)]
    # row-major flatten of (G, C) == lane-concatenation of glimpse slices
    att_flat = jnp.concatenate(glimpse_sems, axis=-1)                 # (B, G*C)

    # semantic = sem2hidden(att_flat): single K = G*C contraction     -> (B, H)
    sem = jnp.dot(att_flat, w_s, preferred_element_type=jnp.float32) + b_s
    out_ref[...] = sem.astype(out_ref.dtype)


def find_module_pallas(feat, query, params):
    b, n, h = feat.shape
    (wm, bm, wp, wc, bc, wx, bx, ws, bs) = params

    # Algebraic fusion: mem2concept followed by the bias-free prototype layer
    # is a single affine map (exact, done once in the wrapper).
    w_fp = wm @ wp                                     # (H, C)
    b_fp = bm @ wp                                     # (1, C)

    # Pack every parameter into one small f32 buffer -> a single input DMA.
    def pad_rows(w):
        return jnp.pad(w, ((0, PACK_W_ROWS - w.shape[0]), (0, 0)))

    w_block = jnp.concatenate(
        [pad_rows(w_fp), pad_rows(wc), pad_rows(ws), pad_rows(wx)], axis=1)
    # bx is intentionally packed as zeros: it cancels in softmax(dim=1).
    b_block = jnp.concatenate(
        [b_fp, bc, bs, jnp.zeros((1, GLIMPSES), jnp.float32)], axis=1)
    pack = jnp.concatenate([w_block, b_block], axis=0)  # (PACK_W_ROWS+1, PACK_COLS)

    feat2d = feat.reshape(b * n, h)
    q2d = query.reshape(b, h)

    sem = pl.pallas_call(
        find_kernel,
        out_shape=jax.ShapeDtypeStruct((b, h), jnp.float32),
        grid=(1,),
        in_specs=[
            pl.BlockSpec((b * n, h), lambda i: (0, 0)),        # feat  (B*N, H)
            pl.BlockSpec((b, h), lambda i: (0, 0)),            # query (B, H)
            pl.BlockSpec(pack.shape, lambda i: (0, 0)),        # packed params
        ],
        out_specs=pl.BlockSpec((b, h), lambda i: (0, 0)),
        compiler_params=pltpu.CompilerParams(
            dimension_semantics=("arbitrary",)),
    )(feat2d, q2d, pack)

    # The module returns semantic.unsqueeze(1).expand(b, n, h): pure
    # replication, done outside the kernel to avoid 8x redundant stores.
    return jnp.broadcast_to(sem[:, None, :], (b, n, h))


def find_module_ref(feat, query, params):
    """Pure-JAX reference mirroring the PyTorch forward (eval mode)."""
    (wm, bm, wp, wc, bc, wx, bx, ws, bs) = params
    b, n, h = feat.shape
    q = jnp.tanh(query @ wc + bc)                       # (B, 1, C)
    mc = feat @ wm + bm                                 # (B, N, D)
    f = jnp.tanh(mc @ wp)                               # (B, N, C)
    x = -(f - q) ** 2 + jax.nn.relu(f + q)              # (B, N, C)
    a = x @ wx + bx                                     # (B, N, G)
    att = jax.nn.softmax(a, axis=1)                     # (B, N, G)
    att_sem = jnp.einsum('bng,bnc->bgc', att, f).reshape(b, -1)   # (B, G*C)
    sem = att_sem @ ws + bs[0]                          # (B, H)
    return jnp.broadcast_to(sem[:, None, :], (b, n, h))


def init_params(key):
    ks = jax.random.split(key, 9)

    def lin(k, fan_in, fan_out):
        s = 1.0 / jnp.sqrt(fan_in)
        return jax.random.uniform(k, (fan_in, fan_out), jnp.float32, -s, s)

    wm = lin(ks[0], HIDDEN, CONCEPT_DIM)                    # mem2concept weight^T
    bm = jax.random.uniform(ks[1], (1, CONCEPT_DIM), jnp.float32, -0.1, 0.1)
    # prototype weight: torch stores (num_concept, concept_dim); we keep its transpose.
    # TODO(synk): real module torch.load's './prototype/prototype_vqa.pt'; synthesized here.
    wp = jax.random.normal(ks[2], (CONCEPT_DIM, NUM_CONCEPT), jnp.float32) * 0.1
    wc = lin(ks[3], HIDDEN, NUM_CONCEPT)                    # map_c weight^T
    bc = jax.random.uniform(ks[4], (1, NUM_CONCEPT), jnp.float32, -0.1, 0.1)
    wx = lin(ks[5], NUM_CONCEPT, GLIMPSES)                  # x_conv weight^T
    bx = jax.random.uniform(ks[6], (1, GLIMPSES), jnp.float32, -0.1, 0.1)
    ws = lin(ks[7], NUM_CONCEPT * GLIMPSES, HIDDEN)         # sem2hidden weight^T
    bs = jax.random.uniform(ks[8], (1, HIDDEN), jnp.float32, -0.1, 0.1)
    return (wm, bm, wp, wc, bc, wx, bx, ws, bs)


if __name__ == "__main__":
    key = jax.random.PRNGKey(0)
    kf, kq, kp = jax.random.split(key, 3)

    feat = jax.random.normal(kf, (B, N, HIDDEN), jnp.float32)
    query = jax.random.normal(kq, (B, 1, HIDDEN), jnp.float32)
    params = init_params(kp)

    out = find_module_pallas(feat, query, params)
    out = jax.block_until_ready(out)

    ref = find_module_ref(feat, query, params)
    assert out.shape == (B, N, HIDDEN)
    assert jnp.allclose(out, ref, atol=1e-4, rtol=1e-4), (
        f"max abs err {jnp.max(jnp.abs(out - ref))}")

    print("KERNEL_OK")
</pallas_src>

<mosaic_0001>
module attributes {stable_mosaic.version = 11 : i64} {
  func.func @find_kernel(%arg0: i32, %arg1: memref<16x32xf32, #tpu.memory_space<vmem>>, %arg2: memref<2x32xf32, #tpu.memory_space<vmem>>, %arg3: memref<33x66xf32, #tpu.memory_space<vmem>>, %arg4: memref<2x32xf32, #tpu.memory_space<vmem>>) attributes {dimension_semantics = [#tpu.dimension_semantics<arbitrary>], iteration_bounds = array<i64: 1>, scalar_prefetch = 0 : i64, scratch_operands = 0 : i64, tpu.core_type = #tpu.core_type<tc>, window_params = [{pipeline_mode = #tpu.pipeline_mode<synchronous>, transform_indices = @transform_0, window_bounds = array<i64: 16, 32>}, {pipeline_mode = #tpu.pipeline_mode<synchronous>, transform_indices = @transform_1, window_bounds = array<i64: 2, 32>}, {pipeline_mode = #tpu.pipeline_mode<synchronous>, transform_indices = @transform_2, window_bounds = array<i64: 33, 66>}, {pipeline_mode = #tpu.pipeline_mode<synchronous>, transform_indices = @transform_3, window_bounds = array<i64: 2, 32>}]} {
    %c0 = arith.constant 0 : index
    %c0_0 = arith.constant 0 : index
    %0 = vector.load %arg1[%c0, %c0_0] : memref<16x32xf32, #tpu.memory_space<vmem>>, vector<16x32xf32>
    %c0_1 = arith.constant 0 : index
    %c0_2 = arith.constant 0 : index
    %1 = vector.load %arg2[%c0_1, %c0_2] : memref<2x32xf32, #tpu.memory_space<vmem>>, vector<2x32xf32>
    %c0_3 = arith.constant 0 : index
    %c0_4 = arith.constant 0 : index
    %2 = vector.load %arg3[%c0_3, %c0_4] : memref<33x66xf32, #tpu.memory_space<vmem>>, vector<33x66xf32>
    %3 = vector.extract_strided_slice %2 {offsets = [0, 0], sizes = [32, 16], strides = [1, 1]} : vector<33x66xf32> to vector<32x16xf32>
    %4 = vector.extract_strided_slice %2 {offsets = [0, 16], sizes = [32, 16], strides = [1, 1]} : vector<33x66xf32> to vector<32x16xf32>
    %5 = vector.extract_strided_slice %2 {offsets = [0, 32], sizes = [32, 32], strides = [1, 1]} : vector<33x66xf32> to vector<32x32xf32>
    %6 = vector.extract_strided_slice %2 {offsets = [0, 64], sizes = [16, 2], strides = [1, 1]} : vector<33x66xf32> to vector<16x2xf32>
    %7 = vector.extract_strided_slice %2 {offsets = [32, 0], sizes = [1, 66], strides = [1, 1]} : vector<33x66xf32> to vector<1x66xf32>
    %8 = vector.extract_strided_slice %7 {offsets = [0, 0], sizes = [1, 16], strides = [1, 1]} : vector<1x66xf32> to vector<1x16xf32>
    %9 = vector.extract_strided_slice %7 {offsets = [0, 16], sizes = [1, 16], strides = [1, 1]} : vector<1x66xf32> to vector<1x16xf32>
    %10 = vector.extract_strided_slice %7 {offsets = [0, 32], sizes = [1, 32], strides = [1, 1]} : vector<1x66xf32> to vector<1x32xf32>
    %cst = arith.constant dense<0.000000e+00> : vector<2x16xf32>
    %11 = tpu.matmul %1, %4, %cst {dimension_numbers = #tpu.dot_dimension_numbers<[1], [0], [0], [1], [0, 0, 1, 1], [], []>} : vector<2x32xf32>, vector<32x16xf32>, vector<2x16xf32> -> vector<2x16xf32>
    %12 = vector.broadcast %9 : vector<1x16xf32> to vector<2x16xf32>
    %13 = arith.addf %11, %12 : vector<2x16xf32>
    %14 = math.tanh %13 : vector<2x16xf32>
    %cst_5 = arith.constant dense<0.000000e+00> : vector<16x16xf32>
    %15 = tpu.matmul %0, %3, %cst_5 {dimension_numbers = #tpu.dot_dimension_numbers<[1], [0], [0], [1], [0, 0, 1, 1], [], []>} : vector<16x32xf32>, vector<32x16xf32>, vector<16x16xf32> -> vector<16x16xf32>
    %16 = vector.broadcast %8 : vector<1x16xf32> to vector<16x16xf32>
    %17 = arith.addf %15, %16 : vector<16x16xf32>
    %18 = math.tanh %17 : vector<16x16xf32>
    %19 = vector.extract_strided_slice %14 {offsets = [0, 0], sizes = [1, 16], strides = [1, 1]} : vector<2x16xf32> to vector<1x16xf32>
    %20 = vector.shape_cast %19 : vector<1x16xf32> to vector<1x16xf32>
    %21 = vector.broadcast %20 : vector<1x16xf32> to vector<8x16xf32>
    %22 = vector.extract_strided_slice %14 {offsets = [1, 0], sizes = [1, 16], strides = [1, 1]} : vector<2x16xf32> to vector<1x16xf32>
    %23 = vector.shape_cast %22 : vector<1x16xf32> to vector<1x16xf32>
    %24 = vector.broadcast %23 : vector<1x16xf32> to vector<8x16xf32>
    %25 = tpu.concatenate %21, %24 in 0 : vector<8x16xf32>, vector<8x16xf32> -> vector<16x16xf32>
    %26 = arith.subf %18, %25 : vector<16x16xf32>
    %27 = arith.mulf %26, %26 : vector<16x16xf32>
    %cst_6 = arith.constant 0.000000e+00 : f32
    %28 = vector.broadcast %cst_6 : f32 to vector<16x16xf32>
    %29 = arith.subf %28, %27 : vector<16x16xf32>
    %30 = arith.addf %18, %25 : vector<16x16xf32>
    %cst_7 = arith.constant 0.000000e+00 : f32
    %31 = vector.broadcast %cst_7 : f32 to vector<16x16xf32>
    %32 = arith.maximumf %30, %31 : vector<16x16xf32>
    %33 = arith.addf %29, %32 : vector<16x16xf32>
    %cst_8 = arith.constant dense<0.000000e+00> : vector<16x2xf32>
    %34 = tpu.matmul %33, %6, %cst_8 {dimension_numbers = #tpu.dot_dimension_numbers<[1], [0], [0], [1], [0, 0, 1, 1], [], []>} : vector<16x16xf32>, vector<16x2xf32>, vector<16x2xf32> -> vector<16x2xf32>
    %35 = vector.shape_cast %34 : vector<16x2xf32> to vector<2x8x2xf32>
    %cst_9 = arith.constant dense<0xFF800000> : vector<2x2xf32>
    %36 = vector.multi_reduction <maximumf>, %35, %cst_9 [1] : vector<2x8x2xf32> to vector<2x2xf32>
    %37 = vector.shape_cast %36 : vector<2x2xf32> to vector<2x1x2xf32>
    %38 = vector.broadcast %37 : vector<2x1x2xf32> to vector<2x8x2xf32>
    %39 = arith.subf %35, %38 : vector<2x8x2xf32>
    %40 = math.exp %39 : vector<2x8x2xf32>
    %cst_10 = arith.constant dense<0.000000e+00> : vector<2x2xf32>
    %41 = vector.multi_reduction <add>, %40, %cst_10 [1] : vector<2x8x2xf32> to vector<2x2xf32>
    %42 = vector.shape_cast %41 : vector<2x2xf32> to vector<2x1x2xf32>
    %43 = tpu.reciprocal %42 : vector<2x1x2xf32> -> vector<2x1x2xf32>
    %44 = vector.broadcast %43 : vector<2x1x2xf32> to vector<2x8x2xf32>
    %45 = arith.mulf %40, %44 : vector<2x8x2xf32>
    %46 = vector.shape_cast %18 : vector<16x16xf32> to vector<2x8x16xf32>
    %47 = vector.extract_strided_slice %45 {offsets = [0, 0, 0], sizes = [2, 8, 1], strides = [1, 1, 1]} : vector<2x8x2xf32> to vector<2x8x1xf32>
    %48 = vector.broadcast %47 : vector<2x8x1xf32> to vector<2x8x16xf32>
    %49 = arith.mulf %48, %46 : vector<2x8x16xf32>
    %cst_11 = arith.constant dense<0.000000e+00> : vector<2x16xf32>
    %50 = vector.multi_reduction <add>, %49, %cst_11 [1] : vector<2x8x16xf32> to vector<2x16xf32>
    %51 = vector.extract_strided_slice %45 {offsets = [0, 0, 1], sizes = [2, 8, 1], strides = [1, 1, 1]} : vector<2x8x2xf32> to vector<2x8x1xf32>
    %52 = vector.broadcast %51 : vector<2x8x1xf32> to vector<2x8x16xf32>
    %53 = arith.mulf %52, %46 : vector<2x8x16xf32>
    %cst_12 = arith.constant dense<0.000000e+00> : vector<2x16xf32>
    %54 = vector.multi_reduction <add>, %53, %cst_12 [1] : vector<2x8x16xf32> to vector<2x16xf32>
    %55 = tpu.concatenate %50, %54 in 1 : vector<2x16xf32>, vector<2x16xf32> -> vector<2x32xf32>
    %cst_13 = arith.constant dense<0.000000e+00> : vector<2x32xf32>
    %56 = tpu.matmul %55, %5, %cst_13 {dimension_numbers = #tpu.dot_dimension_numbers<[1], [0], [0], [1], [0, 0, 1, 1], [], []>} : vector<2x32xf32>, vector<32x32xf32>, vector<2x32xf32> -> vector<2x32xf32>
    %57 = vector.broadcast %10 : vector<1x32xf32> to vector<2x32xf32>
    %58 = arith.addf %56, %57 : vector<2x32xf32>
    %c0_14 = arith.constant 0 : index
    %c0_15 = arith.constant 0 : index
    %59 = vector.load %arg4[%c0_14, %c0_15] : memref<2x32xf32, #tpu.memory_space<vmem>>, vector<2x32xf32>
    tpu.vector_store %arg4[%c0_14, %c0_15], %58 {strides = array<i32>} : memref<2x32xf32, #tpu.memory_space<vmem>>, vector<2x32xf32>,
    return
  }
  func.func @transform_0(%arg0: i32) -> (i32, i32) {
    %c0_i32 = arith.constant 0 : i32
    %c0_i32_0 = arith.constant 0 : i32
    %c0_i32_1 = arith.constant 0 : i32
    return %c0_i32, %c0_i32_0 : i32, i32
  }
  func.func @transform_1(%arg0: i32) -> (i32, i32) {
    %c0_i32 = arith.constant 0 : i32
    %c0_i32_0 = arith.constant 0 : i32
    %c0_i32_1 = arith.constant 0 : i32
    return %c0_i32, %c0_i32_0 : i32, i32
  }
  func.func @transform_2(%arg0: i32) -> (i32, i32) {
    %c0_i32 = arith.constant 0 : i32
    %c0_i32_0 = arith.constant 0 : i32
    %c0_i32_1 = arith.constant 0 : i32
    return %c0_i32, %c0_i32_0 : i32, i32
  }
  func.func @transform_3(%arg0: i32) -> (i32, i32) {
    %c0_i32 = arith.constant 0 : i32
    %c0_i32_0 = arith.constant 0 : i32
    %c0_i32_1 = arith.constant 0 : i32
    return %c0_i32, %c0_i32_0 : i32, i32
  }
}

</mosaic_0001>

<llo_original>
// kernel: tpu_custom_call.1
$region0: #{tpu_custom_call.1}
  #allocation0 [shape = 'u32[]', space=smem, size = 0x4, offset = 0x4, fixed_abs, tag = 'smem constant byte address 0x4 - core index']
  #allocation1 [shape = 'u32[144,128]{1,0:T(1,128)}', space=vmem, size = 0x12000, scoped, tag = 'internal scratch']
  %s0 = inlined_call_operand.hbm [shape: f32[16,32], index: 0, kind: input, shape index: {}]
  %s1 = inlined_call_operand.vmem [shape: f32[2,32], index: 1, kind: input, shape index: {}]
  %s2 = inlined_call_operand.hbm [shape: f32[33,66], index: 2, kind: input, shape index: {}]
  %s3 = inlined_call_operand.hbm [shape: f32[2,32], index: 3, kind: output, shape index: {}]
  %s4 = sld [smem:[#allocation0]]
  $region30: #{tpu_custom_call.1} parent=0
    _
  %s6 = ssub.s32 1, %s4
  %s7 = scalar_select 0, %s6, %s4
  $region1: #{tpu_custom_call.1} parent=0
    #allocation2 [shape = 'u8[8192]{0}', space=vmem, size = 0x2000, scoped, tag = 'input window, operand 0, single buffered']
    #allocation3 [shape = 's32[1]{0}', space=sflag, size = 0x4, scoped, tag = 'scoped memory for tpu_custom_call.1']
    #allocation4 [shape = 's32[1]{0}', space=sflag, size = 0x4, scoped, tag = 'scoped memory for tpu_custom_call.1']
    #allocation5 [shape = 'u8[20480]{0}', space=vmem, size = 0x5000, scoped, tag = 'input window, operand 2, single buffered']
    #allocation6 [shape = 's32[1]{0}', space=sflag, size = 0x4, scoped, tag = 'scoped memory for tpu_custom_call.1']
    #allocation7 [shape = 'u8[1024]{0}', space=vmem, size = 0x400, scoped, tag = 'output window, operand 0, single buffered']
    %8 = vsyncpa [#allocation3], 0
    %9 = vsyncpa [#allocation6], 0
    %10 = vsyncpa [#allocation4], 0
    // Predicated region
    $region2: #{tpu_custom_call.1} parent=1 // pred_check
      _
    $region3: #{tpu_custom_call.1} parent=1 // pred_check_branch
      %12 = sbr.rel (0) target = $region5
    $region4: #{tpu_custom_call.1} parent=1 // pred_region
      %s14 = ssub.s32 256, 256
      %15 = vsyncadd [#allocation3], %s14
      %s16 = sshll.u32 [#allocation2], 4
      %s17 = int_to_ptr.vmem [resolvable:$true] %s16
      %22 = dma.hbm_to_vmem [thread:$0]  %s0, 256, %s17, [#allocation3], 128, 128, 8
    $region5: #{tpu_custom_call.1} parent=1 // pred_fallthru
      _
    // Predicated region
    $region6: #{tpu_custom_call.1} parent=1 // pred_check
      _
    $region7: #{tpu_custom_call.1} parent=1 // pred_check_branch
      %24 = sbr.rel (0) target = $region9
    $region8: #{tpu_custom_call.1} parent=1 // pred_region
      _
    $region9: #{tpu_custom_call.1} parent=1 // pred_fallthru
      _
    // Predicated region
    $region10: #{tpu_custom_call.1} parent=1 // pred_check
      _
    $region11: #{tpu_custom_call.1} parent=1 // pred_check_branch
      %26 = sbr.rel (0) target = $region13
    $region12: #{tpu_custom_call.1} parent=1 // pred_region
      %s28 = ssub.s32 640, 640
      %29 = vsyncadd [#allocation6], %s28
      %s30 = sshll.u32 [#allocation5], 4
      %s31 = int_to_ptr.vmem [resolvable:$true] %s30
      %36 = dma.hbm_to_vmem [thread:$0]  %s2, 640, %s31, [#allocation6], 128, 128, 8
    $region13: #{tpu_custom_call.1} parent=1 // pred_fallthru
      _
    // Predicated region
    $region14: #{tpu_custom_call.1} parent=1 // pred_check
      _
    $region15: #{tpu_custom_call.1} parent=1 // pred_check_branch
      %38 = sbr.rel (0) target = $region17
    $region16: #{tpu_custom_call.1} parent=1 // pred_region
      %39 = dma.done [#allocation3], 256
    $region17: #{tpu_custom_call.1} parent=1 // pred_fallthru
      _
    // Predicated region
    $region18: #{tpu_custom_call.1} parent=1 // pred_check
      _
    $region19: #{tpu_custom_call.1} parent=1 // pred_check_branch
      %41 = sbr.rel (0) target = $region21
    $region20: #{tpu_custom_call.1} parent=1 // pred_region
      %42 = dma.done [#allocation6], 640
    $region21: #{tpu_custom_call.1} parent=1 // pred_fallthru
      _
    %v43 = vld [vmem:[#allocation2] sm:$0xff]
    %v44 = vld [vmem:[#allocation2 + $0x8] sm:$0xff]
    %v45 = vld [vmem:[%s1] sm:$0x3]
    %v46 = vld [vmem:[#allocation5] sm:$0xff]
    %v47 = vld [vmem:[#allocation5 + $0x8] sm:$0xff]
    %v48 = vld [vmem:[#allocation5 + $0x10] sm:$0xff]
    %v49 = vld [vmem:[#allocation5 + $0x18] sm:$0xff]
    %v50 = vld [vmem:[#allocation5 + $0x20] sm:$0x1]
    %v51 = vlaneseq
    %v52 = vshrl.u32 %v51, 7
    %v53 = vsub.s32 0, %v52
    %v54 = vrot.slane %v50, %v53
    %59 = vrot.lane.b32.xlu0 %v46, 112
    %v60 = vpop.permute.xlu0 %59
    %61 = vrot.lane.b32.xlu0 %v47, 112
    %v62 = vpop.permute.xlu0 %61
    %63 = vrot.lane.b32.xlu0 %v48, 112
    %v64 = vpop.permute.xlu0 %63
    %65 = vrot.lane.b32.xlu0 %v49, 112
    %v66 = vpop.permute.xlu0 %65
    %72 = vrot.lane.b32.xlu0 %v54, 112
    %v73 = vpop.permute.xlu0 %72
    %vm75 = vcmask 261120
    %v77 = vsel %vm75, %v45, 0
    %79 = vmatprep.subr.mxu0 0.0
    %80 = vmatpush1.msra.mxu0 %v60
    %81 = vmatprep.subr.mxu0 0.0
    %82 = vmatpush1.msra.mxu0 %v62
    %83 = vmatprep.subr.mxu0 0.0
    %84 = vmatpush1.msra.mxu0 %v64
    %85 = vmatprep.subr.mxu0 0.0
    %86 = vmatpush1.msra.mxu0 %v66
    %87 = vmatprep.subr.mxu0 0.0
    %88 = vmatpush1.msra.mxu0 0.0
    %89 = vmatprep.subr.mxu0 0.0
    %90 = vmatpush1.msra.mxu0 0.0
    %91 = vmatprep.subr.mxu0 0.0
    %92 = vmatpush1.msra.mxu0 0.0
    %93 = vmatprep.subr.mxu0 0.0
    %94 = vmatpush1.msra.mxu0 0.0
    %95 = vmatprep.subr.mxu0 0.0
    %96 = vmatpush1.msra.mxu0 0.0
    %97 = vmatprep.subr.mxu0 0.0
    %98 = vmatpush1.msra.mxu0 0.0
    %99 = vmatprep.subr.mxu0 0.0
    %100 = vmatpush1.msra.mxu0 0.0
    %101 = vmatprep.subr.mxu0 0.0
    %102 = vmatpush1.msra.mxu0 0.0
    %103 = vmatprep.subr.mxu0 0.0
    %104 = vmatpush1.msra.mxu0 0.0
    %105 = vmatprep.subr.mxu0 0.0
    %106 = vmatpush1.msra.mxu0 0.0
    %107 = vmatprep.subr.mxu0 0.0
    %108 = vmatpush1.msra.mxu0 0.0
    %109 = vmatprep.subr.mxu0 0.0
    %110 = vmatpush1.msra.mxu0 0.0
    %111 = vmatprep.subr.mxu0 0.0
    %112 = vmatpush1.msra.mxu0 0.0
    %113 = vmatprep.subr.mxu0 0.0
    %114 = vmatpush1.msra.mxu0 0.0
    %115 = vmatprep.subr.mxu0 0.0
    %116 = vmatpush1.msra.mxu0 0.0
    %117 = vmatprep.subr.mxu0 0.0
    %118 = vmatpush1.msra.mxu0 0.0
    %119 = vmatprep.subr.mxu0 0.0
    %120 = vmatpush1.msra.mxu0 0.0
    %121 = vmatprep.subr.mxu0 0.0
    %122 = vmatpush1.msra.mxu0 0.0
    %123 = vmatprep.subr.mxu0 0.0
    %124 = vmatpush1.msra.mxu0 0.0
    %125 = vmatprep.subr.mxu0 0.0
    %126 = vmatpush1.msra.mxu0 0.0
    %127 = vmatprep.subr.mxu0 0.0
    %128 = vmatpush1.msra.mxu0 0.0
    %129 = vmatprep.subr.mxu0 0.0
    %130 = vmatpush1.msra.mxu0 0.0
    %131 = vmatprep.subr.mxu0 0.0
    %132 = vmatpush1.msra.mxu0 0.0
    %133 = vmatprep.subr.mxu0 0.0
    %134 = vmatpush1.msra.mxu0 0.0
    %135 = vmatprep.subr.mxu0 0.0
    %136 = vmatpush1.msra.mxu0 0.0
    %137 = vmatprep.subr.mxu0 0.0
    %138 = vmatpush1.msra.mxu0 0.0
    %139 = vmatprep.subr.mxu0 0.0
    %140 = vmatpush1.msra.mxu0 0.0
    %141 = vmatprep.subr.mxu0 0.0
    %142 = vmatpush1.msra.mxu0 0.0
    %143 = vmatprep.mubr.f32.mxu0 0.0
    %144 = vmatmul.mubr.f32.gmra.mrb[0].mxu0 %v77
    %v145 = vpop.f32.mrb[0].mxu0
    %v146 = vadd.f32 %v73, %v145
    %v147 = vpop.f32.mrb[0].mxu0
    %148 = vdwg.mxu0
    %v149 = vtanh.pop %v146
    %v151 = vsel %vm75, %v43, 0
    %v154 = vsel %vm75, %v44, 0
    %156 = vmatprep.subr.mxu0 0.0
    %157 = vmatpush1.msra.mxu0 %v46
    %158 = vmatprep.subr.mxu0 0.0
    %159 = vmatpush1.msra.mxu0 %v47
    %160 = vmatprep.subr.mxu0 0.0
    %161 = vmatpush1.msra.mxu0 %v48
    %162 = vmatprep.subr.mxu0 0.0
    %163 = vmatpush1.msra.mxu0 %v49
    %164 = vmatprep.subr.mxu0 0.0
    %165 = vmatpush1.msra.mxu0 0.0
    %166 = vmatprep.subr.mxu0 0.0
    %167 = vmatpush1.msra.mxu0 0.0
    %168 = vmatprep.subr.mxu0 0.0
    %169 = vmatpush1.msra.mxu0 0.0
    %170 = vmatprep.subr.mxu0 0.0
    %171 = vmatpush1.msra.mxu0 0.0
    %172 = vmatprep.subr.mxu0 0.0
    %173 = vmatpush1.msra.mxu0 0.0
    %174 = vmatprep.subr.mxu0 0.0
    %175 = vmatpush1.msra.mxu0 0.0
    %176 = vmatprep.subr.mxu0 0.0
    %177 = vmatpush1.msra.mxu0 0.0
    %178 = vmatprep.subr.mxu0 0.0
    %179 = vmatpush1.msra.mxu0 0.0
    %180 = vmatprep.subr.mxu0 0.0
    %181 = vmatpush1.msra.mxu0 0.0
    %182 = vmatprep.subr.mxu0 0.0
    %183 = vmatpush1.msra.mxu0 0.0
    %184 = vmatprep.subr.mxu0 0.0
    %185 = vmatpush1.msra.mxu0 0.0
    %186 = vmatprep.subr.mxu0 0.0
    %187 = vmatpush1.msra.mxu0 0.0
    %188 = vmatprep.subr.mxu0 0.0
    %189 = vmatpush1.msra.mxu0 0.0
    %190 = vmatprep.subr.mxu0 0.0
    %191 = vmatpush1.msra.mxu0 0.0
    %192 = vmatprep.subr.mxu0 0.0
    %193 = vmatpush1.msra.mxu0 0.0
    %194 = vmatprep.subr.mxu0 0.0
    %195 = vmatpush1.msra.mxu0 0.0
    %196 = vmatprep.subr.mxu0 0.0
    %197 = vmatpush1.msra.mxu0 0.0
    %198 = vmatprep.subr.mxu0 0.0
    %199 = vmatpush1.msra.mxu0 0.0
    %200 = vmatprep.subr.mxu0 0.0
    %201 = vmatpush1.msra.mxu0 0.0
    %202 = vmatprep.subr.mxu0 0.0
    %203 = vmatpush1.msra.mxu0 0.0
    %204 = vmatprep.subr.mxu0 0.0
    %205 = vmatpush1.msra.mxu0 0.0
    %206 = vmatprep.subr.mxu0 0.0
    %207 = vmatpush1.msra.mxu0 0.0
    %208 = vmatprep.subr.mxu0 0.0
    %209 = vmatpush1.msra.mxu0 0.0
    %210 = vmatprep.subr.mxu0 0.0
    %211 = vmatpush1.msra.mxu0 0.0
    %212 = vmatprep.subr.mxu0 0.0
    %213 = vmatpush1.msra.mxu0 0.0
    %214 = vmatprep.subr.mxu0 0.0
    %215 = vmatpush1.msra.mxu0 0.0
    %216 = vmatprep.subr.mxu0 0.0
    %217 = vmatpush1.msra.mxu0 0.0
    %218 = vmatprep.subr.mxu0 0.0
    %219 = vmatpush1.msra.mxu0 0.0
    %220 = vmatprep.mubr.f32.mxu0 0.0
    %221 = vmatmul.mubr.f32.gmra.mrb[0].mxu0 %v151
    %v222 = vpop.f32.mrb[0].mxu0
    %v223 = vadd.f32 %v54, %v222
    %v224 = vpop.f32.mrb[0].mxu0
    %225 = vmatprep.mubr.f32.mxu0 0.0
    %226 = vmatmul.mubr.f32.gmra.mrb[0].mxu0 %v154
    %v227 = vpop.f32.mrb[0].mxu0
    %v228 = vadd.f32 %v54, %v227
    %v229 = vpop.f32.mrb[0].mxu0
    %230 = vdwg.mxu0
    %v231 = vtanh.pop %v223
    %v232 = vtanh.pop %v228
    %v233 = vlaneseq
    %v234 = vshrl.u32 %v233, 7
    %v235 = vsub.s32 0, %v234
    %v236 = vrot.slane %v149, %v235
    %v237 = vlaneseq
    %v238 = vshrl.u32 %v237, 7
    %v239 = vsub.s32 1, %v238
    %v240 = vrot.slane %v149, %v239
    %v241 = vsub.f32 %v231, %v236
    %v242 = vsub.f32 %v232, %v240
    %v243 = vmul.f32 %v241, %v241
    %v244 = vmul.f32 %v242, %v242
    %v245 = vsub.f32 0.0, %v243
    %v246 = vsub.f32 0.0, %v244
    %v247 = vadd.f32 %v231, %v236
    %v248 = vadd.f32 %v232, %v240
    %v249 = vmax.f32 %v247, 0.0
    %v250 = vmax.f32 %v248, 0.0
    %v251 = vadd.f32 %v245, %v249
    %v252 = vadd.f32 %v246, %v250
    %253 = vrot.lane.b32.xlu0 %v46, 64
    %v254 = vpop.permute.xlu0 %253
    %255 = vrot.lane.b32.xlu0 %v47, 64
    %v256 = vpop.permute.xlu0 %255
    %vm259 = vcmask 130048
    %v261 = vsel %vm259, %v251, 0
    %v264 = vsel %vm259, %v252, 0
    %266 = vmatprep.subr.mxu0 0.0
    %267 = vmatpush1.msra.mxu0 %v254
    %268 = vmatprep.subr.mxu0 0.0
    %269 = vmatpush1.msra.mxu0 %v256
    %270 = vmatprep.subr.mxu0 0.0
    %271 = vmatpush1.msra.mxu0 0.0
    %272 = vmatprep.subr.mxu0 0.0
    %273 = vmatpush1.msra.mxu0 0.0
    %274 = vmatprep.subr.mxu0 0.0
    %275 = vmatpush1.msra.mxu0 0.0
    %276 = vmatprep.subr.mxu0 0.0
    %277 = vmatpush1.msra.mxu0 0.0
    %278 = vmatprep.subr.mxu0 0.0
    %279 = vmatpush1.msra.mxu0 0.0
    %280 = vmatprep.subr.mxu0 0.0
    %281 = vmatpush1.msra.mxu0 0.0
    %282 = vmatprep.subr.mxu0 0.0
    %283 = vmatpush1.msra.mxu0 0.0
    %284 = vmatprep.subr.mxu0 0.0
    %285 = vmatpush1.msra.mxu0 0.0
    %286 = vmatprep.subr.mxu0 0.0
    %287 = vmatpush1.msra.mxu0 0.0
    %288 = vmatprep.subr.mxu0 0.0
    %289 = vmatpush1.msra.mxu0 0.0
    %290 = vmatprep.subr.mxu0 0.0
    %291 = vmatpush1.msra.mxu0 0.0
    %292 = vmatprep.subr.mxu0 0.0
    %293 = vmatpush1.msra.mxu0 0.0
    %294 = vmatprep.subr.mxu0 0.0
    %295 = vmatpush1.msra.mxu0 0.0
    %296 = vmatprep.subr.mxu0 0.0
    %297 = vmatpush1.msra.mxu0 0.0
    %298 = vmatprep.subr.mxu0 0.0
    %299 = vmatpush1.msra.mxu0 0.0
    %300 = vmatprep.subr.mxu0 0.0
    %301 = vmatpush1.msra.mxu0 0.0
    %302 = vmatprep.subr.mxu0 0.0
    %303 = vmatpush1.msra.mxu0 0.0
    %304 = vmatprep.subr.mxu0 0.0
    %305 = vmatpush1.msra.mxu0 0.0
    %306 = vmatprep.subr.mxu0 0.0
    %307 = vmatpush1.msra.mxu0 0.0
    %308 = vmatprep.subr.mxu0 0.0
    %309 = vmatpush1.msra.mxu0 0.0
    %310 = vmatprep.subr.mxu0 0.0
    %311 = vmatpush1.msra.mxu0 0.0
    %312 = vmatprep.subr.mxu0 0.0
    %313 = vmatpush1.msra.mxu0 0.0
    %314 = vmatprep.subr.mxu0 0.0
    %315 = vmatpush1.msra.mxu0 0.0
    %316 = vmatprep.subr.mxu0 0.0
    %317 = vmatpush1.msra.mxu0 0.0
    %318 = vmatprep.subr.mxu0 0.0
    %319 = vmatpush1.msra.mxu0 0.0
    %320 = vmatprep.subr.mxu0 0.0
    %321 = vmatpush1.msra.mxu0 0.0
    %322 = vmatprep.subr.mxu0 0.0
    %323 = vmatpush1.msra.mxu0 0.0
    %324 = vmatprep.subr.mxu0 0.0
    %325 = vmatpush1.msra.mxu0 0.0
    %326 = vmatprep.subr.mxu0 0.0
    %327 = vmatpush1.msra.mxu0 0.0
    %328 = vmatprep.subr.mxu0 0.0
    %329 = vmatpush1.msra.mxu0 0.0
    %330 = vmatprep.mubr.f32.mxu0 0.0
    %331 = vmatmul.mubr.f32.gmra.mrb[0].mxu0 %v261
    %v332 = vpop.f32.mrb[0].mxu0
    %v333 = vadd.f32 0.0, %v332
    %v334 = vpop.f32.mrb[0].mxu0
    %335 = vmatprep.mubr.f32.mxu0 0.0
    %336 = vmatmul.mubr.f32.gmra.mrb[0].mxu0 %v264
    %v337 = vpop.f32.mrb[0].mxu0
    %v338 = vadd.f32 0.0, %v337
    %v339 = vpop.f32.mrb[0].mxu0
    %340 = vdwg.mxu0
    %vm341 = vcmask 15360
    %v342 = vsel %vm341, %v333, -inf
    %v343 = vrot.slane %v342, 4
    %v344 = vmax.f32 %v342, %v343
    %v345 = vrot.slane %v344, 2
    %v346 = vmax.f32 %v344, %v345
    %v347 = vrot.slane %v346, 1
    %v348 = vmax.f32 %v346, %v347
    %v349 = vsel %vm341, %v338, -inf
    %v350 = vrot.slane %v349, 4
    %v351 = vmax.f32 %v349, %v350
    %v352 = vrot.slane %v351, 2
    %v353 = vmax.f32 %v351, %v352
    %v354 = vrot.slane %v353, 1
    %v355 = vmax.f32 %v353, %v354
    %v356 = vsub.f32 %v333, %v348
    %v357 = vsub.f32 %v338, %v355
    %v358 = vmul.f32 %v356, 1.442695
    %v359 = vpow.pop %v358
    %v360 = vmul.f32 %v357, 1.442695
    %v361 = vpow.pop %v360
    %v362 = vsel %vm341, %v359, 0.0
    %v363 = vrot.slane %v362, 4
    %v364 = vadd.f32 %v362, %v363
    %v365 = vrot.slane %v364, 2
    %v366 = vadd.f32 %v364, %v365
    %v367 = vrot.slane %v366, 1
    %v368 = vadd.f32 %v366, %v367
    %v369 = vsel %vm341, %v361, 0.0
    %v370 = vrot.slane %v369, 4
    %v371 = vadd.f32 %v369, %v370
    %v372 = vrot.slane %v371, 2
    %v373 = vadd.f32 %v371, %v372
    %v374 = vrot.slane %v373, 1
    %v375 = vadd.f32 %v373, %v374
    %v376 = vrcp.pop %v368
    %v377 = vrcp.pop %v375
    %v378 = vmul.f32 %v359, %v376
    %v379 = vmul.f32 %v361, %v377
    %381 = vset.pattern.permute.xlu0 0
    %382 = vperm.xlu0 %381, %v378
    %v383 = vpop.permute.xlu0 %382
    %386 = vset.pattern.permute.xlu0 0
    %387 = vperm.xlu0 %386, %v379
    %v388 = vpop.permute.xlu0 %387
    %v390 = vmul.f32 %v383, %v231
    %v391 = vmul.f32 %v388, %v232
    %v392 = vsel %vm259, %v390, 0.0
    %v393 = vrot.slane %v392, 4
    %v394 = vadd.f32 %v392, %v393
    %v395 = vrot.slane %v394, 2
    %v396 = vadd.f32 %v394, %v395
    %v397 = vrot.slane %v396, 1
    %v398 = vadd.f32 %v396, %v397
    %v399 = vsel %vm259, %v391, 0.0
    %v400 = vrot.slane %v399, 4
    %v401 = vadd.f32 %v399, %v400
    %v402 = vrot.slane %v401, 2
    %v403 = vadd.f32 %v401, %v402
    %v404 = vrot.slane %v403, 1
    %v405 = vadd.f32 %v403, %v404
    %406 = vset.pattern.permute.xlu0 1
    %407 = vperm.xlu0 %406, %v378
    %v408 = vpop.permute.xlu0 %407
    %410 = vset.pattern.permute.xlu0 1
    %411 = vperm.xlu0 %410, %v379
    %v412 = vpop.permute.xlu0 %411
    %v414 = vmul.f32 %v408, %v231
    %v415 = vmul.f32 %v412, %v232
    %v416 = vsel %vm259, %v414, 0.0
    %v417 = vrot.slane %v416, 4
    %v418 = vadd.f32 %v416, %v417
    %v419 = vrot.slane %v418, 2
    %v420 = vadd.f32 %v418, %v419
    %v421 = vrot.slane %v420, 1
    %v422 = vadd.f32 %v420, %v421
    %v423 = vsel %vm259, %v415, 0.0
    %v424 = vrot.slane %v423, 4
    %v425 = vadd.f32 %v423, %v424
    %v426 = vrot.slane %v425, 2
    %v427 = vadd.f32 %v425, %v426
    %v428 = vrot.slane %v427, 1
    %v429 = vadd.f32 %v427, %v428
    %vm432 = vcmask 1041409
    %v433 = vsel %vm432, %v405, %v398
    %v437 = vsel %vm432, %v429, %v422
    %438 = vrot.lane.b32.xlu0 %v437, 16
    %v439 = vpop.permute.xlu0 %438
    %v441 = vsel %vm259, %v433, %v439
    %442 = vrot.lane.b32.xlu0 %v46, 96
    %v443 = vpop.permute.xlu0 %442
    %444 = vrot.lane.b32.xlu0 %v47, 96
    %v445 = vpop.permute.xlu0 %444
    %446 = vrot.lane.b32.xlu0 %v48, 96
    %v447 = vpop.permute.xlu0 %446
    %448 = vrot.lane.b32.xlu0 %v49, 96
    %v449 = vpop.permute.xlu0 %448
    %454 = vrot.lane.b32.xlu0 %v54, 96
    %v455 = vpop.permute.xlu0 %454
    %v458 = vsel %vm75, %v441, 0
    %460 = vmatprep.subr.mxu0 0.0
    %461 = vmatpush1.msra.mxu0 %v443
    %462 = vmatprep.subr.mxu0 0.0
    %463 = vmatpush1.msra.mxu0 %v445
    %464 = vmatprep.subr.mxu0 0.0
    %465 = vmatpush1.msra.mxu0 %v447
    %466 = vmatprep.subr.mxu0 0.0
    %467 = vmatpush1.msra.mxu0 %v449
    %468 = vmatprep.subr.mxu0 0.0
    %469 = vmatpush1.msra.mxu0 0.0
    %470 = vmatprep.subr.mxu0 0.0
    %471 = vmatpush1.msra.mxu0 0.0
    %472 = vmatprep.subr.mxu0 0.0
    %473 = vmatpush1.msra.mxu0 0.0
    %474 = vmatprep.subr.mxu0 0.0
    %475 = vmatpush1.msra.mxu0 0.0
    %476 = vmatprep.subr.mxu0 0.0
    %477 = vmatpush1.msra.mxu0 0.0
    %478 = vmatprep.subr.mxu0 0.0
    %479 = vmatpush1.msra.mxu0 0.0
    %480 = vmatprep.subr.mxu0 0.0
    %481 = vmatpush1.msra.mxu0 0.0
    %482 = vmatprep.subr.mxu0 0.0
    %483 = vmatpush1.msra.mxu0 0.0
    %484 = vmatprep.subr.mxu0 0.0
    %485 = vmatpush1.msra.mxu0 0.0
    %486 = vmatprep.subr.mxu0 0.0
    %487 = vmatpush1.msra.mxu0 0.0
    %488 = vmatprep.subr.mxu0 0.0
    %489 = vmatpush1.msra.mxu0 0.0
    %490 = vmatprep.subr.mxu0 0.0
    %491 = vmatpush1.msra.mxu0 0.0
    %492 = vmatprep.subr.mxu0 0.0
    %493 = vmatpush1.msra.mxu0 0.0
    %494 = vmatprep.subr.mxu0 0.0
    %495 = vmatpush1.msra.mxu0 0.0
    %496 = vmatprep.subr.mxu0 0.0
    %497 = vmatpush1.msra.mxu0 0.0
    %498 = vmatprep.subr.mxu0 0.0
    %499 = vmatpush1.msra.mxu0 0.0
    %500 = vmatprep.subr.mxu0 0.0
    %501 = vmatpush1.msra.mxu0 0.0
    %502 = vmatprep.subr.mxu0 0.0
    %503 = vmatpush1.msra.mxu0 0.0
    %504 = vmatprep.subr.mxu0 0.0
    %505 = vmatpush1.msra.mxu0 0.0
    %506 = vmatprep.subr.mxu0 0.0
    %507 = vmatpush1.msra.mxu0 0.0
    %508 = vmatprep.subr.mxu0 0.0
    %509 = vmatpush1.msra.mxu0 0.0
    %510 = vmatprep.subr.mxu0 0.0
    %511 = vmatpush1.msra.mxu0 0.0
    %512 = vmatprep.subr.mxu0 0.0
    %513 = vmatpush1.msra.mxu0 0.0
    %514 = vmatprep.subr.mxu0 0.0
    %515 = vmatpush1.msra.mxu0 0.0
    %516 = vmatprep.subr.mxu0 0.0
    %517 = vmatpush1.msra.mxu0 0.0
    %518 = vmatprep.subr.mxu0 0.0
    %519 = vmatpush1.msra.mxu0 0.0
    %520 = vmatprep.subr.mxu0 0.0
    %521 = vmatpush1.msra.mxu0 0.0
    %522 = vmatprep.subr.mxu0 0.0
    %523 = vmatpush1.msra.mxu0 0.0
    %524 = vmatprep.mubr.f32.mxu0 0.0
    %525 = vmatmul.mubr.f32.gmra.mrb[0].mxu0 %v458
    %v526 = vpop.f32.mrb[0].mxu0
    %v527 = vadd.f32 %v455, %v526
    %v528 = vpop.f32.mrb[0].mxu0
    %529 = vdwg.mxu0
    %vm530 = vcmask 254976
    %531 = vst.msk [vmem:[#allocation7] sm:$0x3] %vm530, %v527
    // Predicated region
    $region22: #{tpu_custom_call.1} parent=1 // pred_check
      _
    $region23: #{tpu_custom_call.1} parent=1 // pred_check_branch
      %533 = sbr.rel (0) target = $region25
    $region24: #{tpu_custom_call.1} parent=1 // pred_region
      %s535 = ssub.s32 32, 32
      %536 = vsyncadd [#allocation4], %s535
      %s538 = sshll.u32 [#allocation7], 4
      %s539 = int_to_ptr.vmem [resolvable:$true] %s538
      %541 = dma.vmem_to_hbm [thread:$0]  %s539, 32, %s3, [#allocation4]
    $region25: #{tpu_custom_call.1} parent=1 // pred_fallthru
      _
    // Predicated region
    $region26: #{tpu_custom_call.1} parent=1 // pred_check
      _
    $region27: #{tpu_custom_call.1} parent=1 // pred_check_branch
      %543 = sbr.rel (0) target = $region29
    $region28: #{tpu_custom_call.1} parent=1 // pred_region
      %544 = dma.done [#allocation4], 32
    $region29: #{tpu_custom_call.1} parent=1 // pred_fallthru
      _
    %545 = vsyncpa [#allocation3], 1
    %546 = vsyncpa [#allocation6], 1
    %547 = vsyncpa [#allocation4], 1

</llo_original>
